<compile_context>
chip_gen: v7x
topology: tpu7x:2x2x1
jax: 0.10.0
libtpu: 0.0.40
codegen_flags: <defaults>
</compile_context>

<pallas_src>
import functools

import jax
import jax.numpy as jnp
from jax.experimental import pallas as pl
from jax.experimental.pallas import tpu as pltpu

LANE = 128


def _round_up(x, m):
    return (x + m - 1) // m * m


def _vmem_capacity_bytes():
    try:
        return int(pltpu.get_tpu_info().vmem_capacity_bytes)
    except Exception:
        return 64 << 20  # conservative fallback: v7x per-TensorCore VMEM


_VMEM_CAP = _vmem_capacity_bytes()


def _plan_k(d_in, tk_target):
    """Pick (tk, d_in_padded) so K zero-padding stays small (<=128*(nk-1))
    instead of rounding d_in up to a fixed large tk."""
    d128 = _round_up(d_in, LANE)
    nk = max(1, pl.cdiv(d128, tk_target))
    tk = _round_up(pl.cdiv(d128, nk), LANE)
    return tk, nk * tk


def contrastive_kernel(x_ref, wb_ref, bb_ref, w1_ref, b1_ref, w2_ref, b2_ref,
                       o_ref, acc_ref):
    k = pl.program_id(1)

    @pl.when(k == 0)
    def _init():
        acc_ref[...] = jnp.zeros_like(acc_ref)

    # ---- backbone GEMM, K-blocked: x is f32 in HBM, cast to bf16 on the VPU
    #      here (free VALU slot); bf16 MXU operands, f32 accumulation. ----
    acc_ref[...] += jnp.dot(x_ref[...].astype(jnp.bfloat16), wb_ref[...],
                            preferred_element_type=jnp.float32)

    @pl.when(k == pl.num_programs(1) - 1)
    def _finalize():
        feat = acc_ref[...] + bb_ref[...]                    # (tm, dbb) f32
        # ---- contrastive head: Linear -> ReLU -> Linear ----
        h = jnp.dot(feat.astype(jnp.bfloat16), w1_ref[...],
                    preferred_element_type=jnp.float32) + b1_ref[...]
        h = jnp.maximum(h, 0.0)                              # ReLU in f32
        f = jnp.dot(h.astype(jnp.bfloat16), w2_ref[...],
                    preferred_element_type=jnp.float32) + b2_ref[...]
        # ---- F.normalize(dim=1, eps=1e-12):
        #      f / max(||f||, 1e-12) == f * rsqrt(max(||f||^2, 1e-24)) ----
        sq = jnp.sum(f * f, axis=1, keepdims=True)
        inv = jax.lax.rsqrt(jnp.maximum(sq, 1e-24))
        o_ref[...] = (f * inv).astype(o_ref.dtype)


def prepare_params(params, *, tk_target=3072):
    """One-time padding + bf16 cast of the weights (hoisted out of the per-call
    path so every forward does not re-read the weights in f32 and re-write them
    in bf16).  Zero padding is mathematically exact for this network.
    backbone_dim is intentionally NOT padded to 128 lanes in HBM."""
    wb, bb = params["wb"], params["bb"]
    w1, b1 = params["w1"], params["b1"]
    w2, b2 = params["w2"], params["b2"]
    d_in, dbb = wb.shape
    fdim = w2.shape[1]

    tk, d_in_p = _plan_k(d_in, tk_target)
    f_p = _round_up(fdim, LANE)

    wbp = jnp.pad(wb.astype(jnp.bfloat16), ((0, d_in_p - d_in), (0, 0)))
    w1p = w1.astype(jnp.bfloat16)
    w2p = jnp.pad(w2.astype(jnp.bfloat16), ((0, 0), (0, f_p - fdim)))
    bbp = bb.astype(jnp.float32).reshape(1, dbb)
    b1p = b1.astype(jnp.float32).reshape(1, dbb)
    b2p = jnp.pad(b2.astype(jnp.float32).reshape(1, fdim),
                  ((0, 0), (0, f_p - fdim)))

    prepped = {"wb": wbp, "bb": bbp, "w1": w1p, "b1": b1p, "w2": w2p, "b2": b2p}
    plan = {"tk": int(tk), "features_dim": int(fdim)}
    return prepped, plan


@functools.partial(jax.jit, static_argnames=("tk", "features_dim", "tm"))
def contrastive_model(x_nchw, prepped, *, tk, features_dim, tm=256):
    """x_nchw: (B, C, H, W) float32.  Returns (B, features_dim), L2-normalized.
    `prepped` comes from prepare_params (padded bf16 weights, f32 biases)."""
    B = x_nchw.shape[0]
    x_flat = x_nchw.reshape(B, -1)            # flatten NCHW (row-major), f32
    d_in = x_flat.shape[1]

    wbp, bbp = prepped["wb"], prepped["bb"]
    w1p, b1p = prepped["w1"], prepped["b1"]
    w2p, b2p = prepped["w2"], prepped["b2"]
    d_in_p, dbb = wbp.shape
    f_p = w2p.shape[1]

    # ---- batch tiling: sublane-aligned; keep >=2 batch tiles when B is big
    #      enough so the "parallel" axis can shard across v7x's 2 TensorCores.
    tm = min(tm, _round_up(B, 16))
    if _round_up(B, tm) // tm < 2 and tm > 128:
        tm = max(128, _round_up(pl.cdiv(B, 2), 16))
    b_p = _round_up(B, tm)
    nb, nk = b_p // tm, d_in_p // tk

    # Pad x only if actually required (rows to the batch tile, cols to the K
    # plan); x stays f32 — the bf16 cast happens inside the kernel.
    if (b_p, d_in_p) != (B, d_in):
        xp = jnp.pad(x_flat, ((0, b_p - B), (0, d_in_p - d_in)))
    else:
        xp = x_flat

    # ---- VMEM budget (double-buffered streaming tiles, single-buffered
    #      resident head weights), clamped to ~75% of physical VMEM. ----
    vmem_bytes = (2 * tm * tk * 4                       # x tiles (f32)
                  + 2 * tk * dbb * 2                    # wb tiles (bf16)
                  + dbb * dbb * 2 + dbb * f_p * 2       # w1, w2 (bf16, 1 buf)
                  + 8 * (2 * dbb + f_p) * 4             # biases (f32, sublane pad)
                  + 2 * tm * f_p * 4                    # out (f32)
                  + tm * max(dbb, LANE) * 4)            # accumulator scratch
    vmem_limit = int(min(max(2 * vmem_bytes, 8 << 20), int(0.75 * _VMEM_CAP)))

    cost = pl.CostEstimate(
        flops=int(2 * b_p * (d_in_p * dbb + dbb * dbb + dbb * f_p)),
        transcendentals=int(b_p),
        bytes_accessed=int(b_p * d_in_p * 4 + nb * d_in_p * dbb * 2
                           + (dbb * dbb + dbb * f_p) * 2
                           + (2 * dbb + f_p) * 4
                           + b_p * f_p * 4),
    )

    resident = dict(pipeline_mode=pl.Buffered(1))       # fetched once, 1 buffer

    out = pl.pallas_call(
        contrastive_kernel,
        out_shape=jax.ShapeDtypeStruct((b_p, f_p), jnp.float32),
        grid_spec=pltpu.PrefetchScalarGridSpec(
            num_scalar_prefetch=0,
            grid=(nb, nk),
            in_specs=[
                pl.BlockSpec((tm, tk), lambda i, k: (i, k)),             # x
                pl.BlockSpec((tk, dbb), lambda i, k: (k, 0)),            # wb
                pl.BlockSpec((1, dbb), lambda i, k: (0, 0), **resident),  # bb
                pl.BlockSpec((dbb, dbb), lambda i, k: (0, 0), **resident),  # w1
                pl.BlockSpec((1, dbb), lambda i, k: (0, 0), **resident),  # b1
                pl.BlockSpec((dbb, f_p), lambda i, k: (0, 0), **resident),  # w2
                pl.BlockSpec((1, f_p), lambda i, k: (0, 0), **resident),  # b2
            ],
            out_specs=pl.BlockSpec((tm, f_p), lambda i, k: (i, 0)),
            scratch_shapes=[pltpu.VMEM((tm, dbb), jnp.float32)],
        ),
        compiler_params=pltpu.CompilerParams(
            dimension_semantics=("parallel", "arbitrary"),
            vmem_limit_bytes=vmem_limit,
        ),
        cost_estimate=cost,
    )(xp, wbp, bbp, w1p, b1p, w2p, b2p)

    return out[:B, :features_dim]


def init_params(key, d_in, backbone_dim, features_dim):
    k = jax.random.split(key, 6)
    scale = lambda fan_in: 1.0 / jnp.sqrt(jnp.float32(fan_in))
    # weights stored (in, out) so the kernel does x @ W + b  (== torch x @ W.T + b)
    wb = jax.random.normal(k[0], (d_in, backbone_dim), jnp.float32) * scale(d_in)
    bb = jnp.zeros((1, backbone_dim), jnp.float32)
    w1 = jax.random.normal(k[1], (backbone_dim, backbone_dim), jnp.float32) * scale(backbone_dim)
    b1 = jax.random.normal(k[2], (1, backbone_dim), jnp.float32) * 0.01
    w2 = jax.random.normal(k[3], (backbone_dim, features_dim), jnp.float32) * scale(backbone_dim)
    b2 = jax.random.normal(k[4], (1, features_dim), jnp.float32) * 0.01
    return {"wb": wb, "bb": bb, "w1": w1, "b1": b1, "w2": w2, "b2": b2}


def reference(x_nchw, params):
    """Pure-JAX reference mirroring the PyTorch forward; matmul operands are
    rounded to bf16 exactly like the kernel, accumulation/elementwise in f32."""
    bf = lambda a: a.astype(jnp.bfloat16).astype(jnp.float32)
    B = x_nchw.shape[0]
    x = bf(x_nchw.reshape(B, -1))
    feat = x @ bf(params["wb"]) + params["bb"]
    h = jnp.maximum(bf(feat) @ bf(params["w1"]) + params["b1"], 0.0)
    f = bf(h) @ bf(params["w2"]) + params["b2"]
    n = jnp.sqrt(jnp.sum(f * f, axis=1, keepdims=True))
    return f / jnp.maximum(n, 1e-12)


if __name__ == "__main__":
    B, C, H, W = 2, 4, 16, 16          # small NCHW input
    backbone_dim = 32
    features_dim = 128                 # module default

    key = jax.random.PRNGKey(0)
    kx, kp = jax.random.split(key)
    x = jax.random.normal(kx, (B, C, H, W), jnp.float32)
    params = init_params(kp, C * H * W, backbone_dim, features_dim)

    # TODO(synk): the PyTorch backbone is an injected external module; modeled
    # here as flatten + Linear so the whole forward stays in one fused kernel.
    prepped, plan = prepare_params(params)          # one-time pad / bf16 cast
    out = contrastive_model(x, prepped, tk=plan["tk"],
                            features_dim=plan["features_dim"])
    out = jax.block_until_ready(out)

    ref = reference(x, params)
    assert out.shape == (B, features_dim)
    assert jnp.allclose(out, ref, atol=1e-3, rtol=1e-3), \
        float(jnp.max(jnp.abs(out - ref)))
    # rows are unit-norm
    assert jnp.allclose(jnp.linalg.norm(out, axis=1), 1.0, atol=1e-3)

    print("KERNEL_OK")
</pallas_src>

<mosaic_0001>
module attributes {stable_mosaic.version = 11 : i64} {
  func.func @contrastive_kernel(%arg0: i32, %arg1: i32, %arg2: memref<16x1024xf32, #tpu.memory_space<vmem>>, %arg3: memref<1024x32xbf16, #tpu.memory_space<vmem>>, %arg4: memref<1x32xf32, #tpu.memory_space<vmem>>, %arg5: memref<32x32xbf16, #tpu.memory_space<vmem>>, %arg6: memref<1x32xf32, #tpu.memory_space<vmem>>, %arg7: memref<32x128xbf16, #tpu.memory_space<vmem>>, %arg8: memref<1x128xf32, #tpu.memory_space<vmem>>, %arg9: memref<16x128xf32, #tpu.memory_space<vmem>>, %arg10: memref<16x32xf32, #tpu.memory_space<vmem>>) attributes {dimension_semantics = [#tpu.dimension_semantics<parallel>, #tpu.dimension_semantics<arbitrary>], iteration_bounds = array<i64: 1, 1>, scalar_prefetch = 0 : i64, scratch_operands = 1 : i64, tpu.core_type = #tpu.core_type<tc>, window_params = [{transform_indices = @transform_0, window_bounds = array<i64: 16, 1024>}, {transform_indices = @transform_1, window_bounds = array<i64: 1024, 32>}, {pipeline_mode = #tpu.pipeline_mode<synchronous>, transform_indices = @transform_2, window_bounds = array<i64: 1, 32>}, {pipeline_mode = #tpu.pipeline_mode<synchronous>, transform_indices = @transform_3, window_bounds = array<i64: 32, 32>}, {pipeline_mode = #tpu.pipeline_mode<synchronous>, transform_indices = @transform_4, window_bounds = array<i64: 1, 32>}, {pipeline_mode = #tpu.pipeline_mode<synchronous>, transform_indices = @transform_5, window_bounds = array<i64: 32, 128>}, {pipeline_mode = #tpu.pipeline_mode<synchronous>, transform_indices = @transform_6, window_bounds = array<i64: 1, 128>}, {transform_indices = @transform_7, window_bounds = array<i64: 16, 128>}]} {
    %c0_i32 = arith.constant 0 : i32
    %0 = arith.cmpi eq, %arg1, %c0_i32 : i32
    %1 = arith.extui %0 : i1 to i32
    %c0_i32_0 = arith.constant 0 : i32
    %2 = arith.cmpi ne, %1, %c0_i32_0 : i32
    scf.if %2 {
      %cst_10 = arith.constant 0.000000e+00 : f32
      %13 = vector.broadcast %cst_10 : f32 to vector<16x32xf32>
      %c0_11 = arith.constant 0 : index
      %c0_12 = arith.constant 0 : index
      %14 = vector.load %arg10[%c0_11, %c0_12] : memref<16x32xf32, #tpu.memory_space<vmem>>, vector<16x32xf32>
      tpu.vector_store %arg10[%c0_11, %c0_12], %13 {strides = array<i32>} : memref<16x32xf32, #tpu.memory_space<vmem>>, vector<16x32xf32>,
    } else {
    }
    %c0 = arith.constant 0 : index
    %c0_1 = arith.constant 0 : index
    %3 = vector.load %arg10[%c0, %c0_1] : memref<16x32xf32, #tpu.memory_space<vmem>>, vector<16x32xf32>
    %c0_2 = arith.constant 0 : index
    %c0_3 = arith.constant 0 : index
    %4 = vector.load %arg2[%c0_2, %c0_3] : memref<16x1024xf32, #tpu.memory_space<vmem>>, vector<16x1024xf32>
    %5 = arith.truncf %4 : vector<16x1024xf32> to vector<16x1024xbf16>
    %c0_4 = arith.constant 0 : index
    %c0_5 = arith.constant 0 : index
    %6 = vector.load %arg3[%c0_4, %c0_5] : memref<1024x32xbf16, #tpu.memory_space<vmem>>, vector<1024x32xbf16>
    %cst = arith.constant dense<0.000000e+00> : vector<16x32xf32>
    %7 = tpu.matmul %5, %6, %cst {dimension_numbers = #tpu.dot_dimension_numbers<[1], [0], [0], [1], [0, 0, 1, 1], [], []>} : vector<16x1024xbf16>, vector<1024x32xbf16>, vector<16x32xf32> -> vector<16x32xf32>
    %8 = arith.addf %3, %7 : vector<16x32xf32>
    %c0_6 = arith.constant 0 : index
    %c0_7 = arith.constant 0 : index
    %9 = vector.load %arg10[%c0_6, %c0_7] : memref<16x32xf32, #tpu.memory_space<vmem>>, vector<16x32xf32>
    tpu.vector_store %arg10[%c0_6, %c0_7], %8 {strides = array<i32>} : memref<16x32xf32, #tpu.memory_space<vmem>>, vector<16x32xf32>,
    %c0_i32_8 = arith.constant 0 : i32
    %10 = arith.cmpi eq, %arg1, %c0_i32_8 : i32
    %11 = arith.extui %10 : i1 to i32
    %c0_i32_9 = arith.constant 0 : i32
    %12 = arith.cmpi ne, %11, %c0_i32_9 : i32
    scf.if %12 {
      %c0_10 = arith.constant 0 : index
      %c0_11 = arith.constant 0 : index
      %13 = vector.load %arg10[%c0_10, %c0_11] : memref<16x32xf32, #tpu.memory_space<vmem>>, vector<16x32xf32>
      %c0_12 = arith.constant 0 : index
      %c0_13 = arith.constant 0 : index
      %14 = vector.load %arg4[%c0_12, %c0_13] : memref<1x32xf32, #tpu.memory_space<vmem>>, vector<1x32xf32>
      %15 = vector.broadcast %14 : vector<1x32xf32> to vector<16x32xf32>
      %16 = arith.addf %13, %15 : vector<16x32xf32>
      %17 = arith.truncf %16 : vector<16x32xf32> to vector<16x32xbf16>
      %c0_14 = arith.constant 0 : index
      %c0_15 = arith.constant 0 : index
      %18 = vector.load %arg5[%c0_14, %c0_15] : memref<32x32xbf16, #tpu.memory_space<vmem>>, vector<32x32xbf16>
      %cst_16 = arith.constant dense<0.000000e+00> : vector<16x32xf32>
      %19 = tpu.matmul %17, %18, %cst_16 {dimension_numbers = #tpu.dot_dimension_numbers<[1], [0], [0], [1], [0, 0, 1, 1], [], []>} : vector<16x32xbf16>, vector<32x32xbf16>, vector<16x32xf32> -> vector<16x32xf32>
      %c0_17 = arith.constant 0 : index
      %c0_18 = arith.constant 0 : index
      %20 = vector.load %arg6[%c0_17, %c0_18] : memref<1x32xf32, #tpu.memory_space<vmem>>, vector<1x32xf32>
      %21 = vector.broadcast %20 : vector<1x32xf32> to vector<16x32xf32>
      %22 = arith.addf %19, %21 : vector<16x32xf32>
      %cst_19 = arith.constant 0.000000e+00 : f32
      %23 = vector.broadcast %cst_19 : f32 to vector<16x32xf32>
      %24 = arith.maximumf %22, %23 : vector<16x32xf32>
      %25 = arith.truncf %24 : vector<16x32xf32> to vector<16x32xbf16>
      %c0_20 = arith.constant 0 : index
      %c0_21 = arith.constant 0 : index
      %26 = vector.load %arg7[%c0_20, %c0_21] : memref<32x128xbf16, #tpu.memory_space<vmem>>, vector<32x128xbf16>
      %cst_22 = arith.constant dense<0.000000e+00> : vector<16x128xf32>
      %27 = tpu.matmul %25, %26, %cst_22 {dimension_numbers = #tpu.dot_dimension_numbers<[1], [0], [0], [1], [0, 0, 1, 1], [], []>} : vector<16x32xbf16>, vector<32x128xbf16>, vector<16x128xf32> -> vector<16x128xf32>
      %c0_23 = arith.constant 0 : index
      %c0_24 = arith.constant 0 : index
      %28 = vector.load %arg8[%c0_23, %c0_24] : memref<1x128xf32, #tpu.memory_space<vmem>>, vector<1x128xf32>
      %29 = vector.broadcast %28 : vector<1x128xf32> to vector<16x128xf32>
      %30 = arith.addf %27, %29 : vector<16x128xf32>
      %31 = arith.mulf %30, %30 : vector<16x128xf32>
      %cst_25 = arith.constant dense<0.000000e+00> : vector<16xf32>
      %32 = vector.multi_reduction <add>, %31, %cst_25 [1] : vector<16x128xf32> to vector<16xf32>
      %33 = vector.shape_cast %32 : vector<16xf32> to vector<16x1xf32>
      %cst_26 = arith.constant 1.000000e-24 : f32
      %34 = vector.broadcast %cst_26 : f32 to vector<16x1xf32>
      %35 = arith.maximumf %33, %34 : vector<16x1xf32>
      %36 = math.rsqrt %35 : vector<16x1xf32>
      %37 = vector.broadcast %36 : vector<16x1xf32> to vector<16x128xf32>
      %38 = arith.mulf %30, %37 : vector<16x128xf32>
      %c0_27 = arith.constant 0 : index
      %c0_28 = arith.constant 0 : index
      %39 = vector.load %arg9[%c0_27, %c0_28] : memref<16x128xf32, #tpu.memory_space<vmem>>, vector<16x128xf32>
      tpu.vector_store %arg9[%c0_27, %c0_28], %38 {strides = array<i32>} : memref<16x128xf32, #tpu.memory_space<vmem>>, vector<16x128xf32>,
    } else {
    }
    return
  }
  func.func @transform_0(%arg0: i32, %arg1: i32) -> (i32, i32) {
    %c0_i32 = arith.constant 0 : i32
    return %arg0, %arg1 : i32, i32
  }
  func.func @transform_1(%arg0: i32, %arg1: i32) -> (i32, i32) {
    %c0_i32 = arith.constant 0 : i32
    %c0_i32_0 = arith.constant 0 : i32
    return %arg1, %c0_i32 : i32, i32
  }
  func.func @transform_2(%arg0: i32, %arg1: i32) -> (i32, i32) {
    %c0_i32 = arith.constant 0 : i32
    %c0_i32_0 = arith.constant 0 : i32
    %c0_i32_1 = arith.constant 0 : i32
    return %c0_i32, %c0_i32_0 : i32, i32
  }
  func.func @transform_3(%arg0: i32, %arg1: i32) -> (i32, i32) {
    %c0_i32 = arith.constant 0 : i32
    %c0_i32_0 = arith.constant 0 : i32
    %c0_i32_1 = arith.constant 0 : i32
    return %c0_i32, %c0_i32_0 : i32, i32
  }
  func.func @transform_4(%arg0: i32, %arg1: i32) -> (i32, i32) {
    %c0_i32 = arith.constant 0 : i32
    %c0_i32_0 = arith.constant 0 : i32
    %c0_i32_1 = arith.constant 0 : i32
    return %c0_i32, %c0_i32_0 : i32, i32
  }
  func.func @transform_5(%arg0: i32, %arg1: i32) -> (i32, i32) {
    %c0_i32 = arith.constant 0 : i32
    %c0_i32_0 = arith.constant 0 : i32
    %c0_i32_1 = arith.constant 0 : i32
    return %c0_i32, %c0_i32_0 : i32, i32
  }
  func.func @transform_6(%arg0: i32, %arg1: i32) -> (i32, i32) {
    %c0_i32 = arith.constant 0 : i32
    %c0_i32_0 = arith.constant 0 : i32
    %c0_i32_1 = arith.constant 0 : i32
    return %c0_i32, %c0_i32_0 : i32, i32
  }
  func.func @transform_7(%arg0: i32, %arg1: i32) -> (i32, i32) {
    %c0_i32 = arith.constant 0 : i32
    %c0_i32_0 = arith.constant 0 : i32
    return %arg0, %c0_i32 : i32, i32
  }
}

</mosaic_0001>

<llo_original>
// kernel: contrastive_model.1
$region0: #{contrastive_model.1}
  #allocation0 [shape = 'u32[]', space=smem, size = 0x4, offset = 0x4, fixed_abs, tag = 'smem constant byte address 0x4 - core index']
  #allocation1 [shape = 'u32[144,128]{1,0:T(1,128)}', space=vmem, size = 0x12000, scoped, tag = 'internal scratch']
  #allocation2 [shape = 'f32[16,32]{1,0:T(8,128)}', space=vmem, size = 0x2000, scoped, tag = 'scratch operand']
  %s0 = inlined_call_operand.vmem [shape: f32[16,1024], index: 0, kind: input, shape index: {}]
  %s1 = inlined_call_operand.vmem [shape: bf16[1024,32], index: 1, kind: input, shape index: {}]
  %s2 = inlined_call_operand.vmem [shape: f32[1,32], index: 2, kind: input, shape index: {}]
  %s3 = inlined_call_operand.vmem [shape: bf16[32,32], index: 3, kind: input, shape index: {}]
  %s4 = inlined_call_operand.vmem [shape: f32[1,32], index: 4, kind: input, shape index: {}]
  %s5 = inlined_call_operand.vmem [shape: bf16[32,128], index: 5, kind: input, shape index: {}]
  %s6 = inlined_call_operand.vmem [shape: f32[1,128], index: 6, kind: input, shape index: {}]
  %s7 = inlined_call_operand.vmem [shape: f32[16,128], index: 7, kind: output, shape index: {}]
  %s8 = sld [smem:[#allocation0]]
  $region46: #{contrastive_model.1} parent=0
    _
  %s10 = ssub.s32 1, %s8
  %s11 = scalar_select 0, %s10, %s8
  // Predicated region
  $region2: #{contrastive_model.1} parent=0 // pred_check
    _
  $region3: #{contrastive_model.1} parent=0 // pred_check_branch
    %13 = sbr.rel (0) target = $region5
  $region4: #{contrastive_model.1} parent=0 // pred_region
    _
  $region5: #{contrastive_model.1} parent=0 // pred_fallthru
    _
  // Predicated region
  $region6: #{contrastive_model.1} parent=0 // pred_check
    _
  $region7: #{contrastive_model.1} parent=0 // pred_check_branch
    %15 = sbr.rel (0) target = $region9
  $region8: #{contrastive_model.1} parent=0 // pred_region
    _
  $region9: #{contrastive_model.1} parent=0 // pred_fallthru
    _
  // Predicated region
  $region10: #{contrastive_model.1} parent=0 // pred_check
    _
  $region11: #{contrastive_model.1} parent=0 // pred_check_branch
    %17 = sbr.rel (0) target = $region13
  $region12: #{contrastive_model.1} parent=0 // pred_region
    _
  $region13: #{contrastive_model.1} parent=0 // pred_fallthru
    _
  // Predicated region
  $region14: #{contrastive_model.1} parent=0 // pred_check
    _
  $region15: #{contrastive_model.1} parent=0 // pred_check_branch
    %19 = sbr.rel (0) target = $region17
  $region16: #{contrastive_model.1} parent=0 // pred_region
    _
  $region17: #{contrastive_model.1} parent=0 // pred_fallthru
    _
  // Predicated region
  $region18: #{contrastive_model.1} parent=0 // pred_check
    _
  $region19: #{contrastive_model.1} parent=0 // pred_check_branch
    %21 = sbr.rel (0) target = $region21
  $region20: #{contrastive_model.1} parent=0 // pred_region
    _
  $region21: #{contrastive_model.1} parent=0 // pred_fallthru
    _
  // Predicated region
  $region22: #{contrastive_model.1} parent=0 // pred_check
    _
  $region23: #{contrastive_model.1} parent=0 // pred_check_branch
    %23 = sbr.rel (0) target = $region25
  $region24: #{contrastive_model.1} parent=0 // pred_region
    _
  $region25: #{contrastive_model.1} parent=0 // pred_fallthru
    _
  // Predicated region
  $region26: #{contrastive_model.1} parent=0 // pred_check
    _
  $region27: #{contrastive_model.1} parent=0 // pred_check_branch
    %25 = sbr.rel (0) target = $region29
  $region28: #{contrastive_model.1} parent=0 // pred_region
    _
  $region29: #{contrastive_model.1} parent=0 // pred_fallthru
    _
  %p27 = scmp.eq.s32.totalorder 0, 0
  // Predicated region
  $region30: #{contrastive_model.1} parent=0 // pred_check
    %p28 = pneg %p27
  $region31: #{contrastive_model.1} parent=0 // pred_check_branch
    %30 = sbr.rel (%p28) target = $region33
  $region32: #{contrastive_model.1} parent=0 // pred_region
    %vm31 = vcmask 261120
    %32 = vst.msk [vmem:[#allocation2] sm:$0xff] %vm31, 0.0
    %33 = vst.msk [vmem:[#allocation2 + $0x8] sm:$0xff] %vm31, 0.0
  $region33: #{contrastive_model.1} parent=0 // pred_fallthru
    _
  %v34 = vld [vmem:[#allocation2] sm:$0xff]
  %v35 = vld [vmem:[#allocation2 + $0x8] sm:$0xff]
  %v36 = vld [vmem:[%s0] sm:$0xff]
  %v37 = vld [vmem:[%s0 + $0x8] sm:$0xff]
  %v38 = vld [vmem:[%s0 + $0x10] sm:$0xff]
  %v39 = vld [vmem:[%s0 + $0x18] sm:$0xff]
  %v40 = vld [vmem:[%s0 + $0x20] sm:$0xff]
  %v41 = vld [vmem:[%s0 + $0x28] sm:$0xff]
  %v42 = vld [vmem:[%s0 + $0x30] sm:$0xff]
  %v43 = vld [vmem:[%s0 + $0x38] sm:$0xff]
  %v44 = vld [vmem:[%s0 + $0x40] sm:$0xff]
  %v45 = vld [vmem:[%s0 + $0x48] sm:$0xff]
  %v46 = vld [vmem:[%s0 + $0x50] sm:$0xff]
  %v47 = vld [vmem:[%s0 + $0x58] sm:$0xff]
  %v48 = vld [vmem:[%s0 + $0x60] sm:$0xff]
  %v49 = vld [vmem:[%s0 + $0x68] sm:$0xff]
  %v50 = vld [vmem:[%s0 + $0x70] sm:$0xff]
  %v51 = vld [vmem:[%s0 + $0x78] sm:$0xff]
  %v52 = vpack.c.bf16 %v44, %v36
  %v53 = vpack.c.bf16 %v45, %v37
  %v54 = vpack.c.bf16 %v46, %v38
  %v55 = vpack.c.bf16 %v47, %v39
  %v56 = vpack.c.bf16 %v48, %v40
  %v57 = vpack.c.bf16 %v49, %v41
  %v58 = vpack.c.bf16 %v50, %v42
  %v59 = vpack.c.bf16 %v51, %v43
  %v60 = vld [vmem:[%s1] sm:$0xf]
  %v61 = vld [vmem:[%s1 + $0x4] sm:$0xf]
  %v62 = vld [vmem:[%s1 + $0x8] sm:$0xf]
  %v63 = vld [vmem:[%s1 + $0xc] sm:$0xf]
  %v64 = vld [vmem:[%s1 + $0x10] sm:$0xf]
  %v65 = vld [vmem:[%s1 + $0x14] sm:$0xf]
  %v66 = vld [vmem:[%s1 + $0x18] sm:$0xf]
  %v67 = vld [vmem:[%s1 + $0x1c] sm:$0xf]
  %v68 = vld [vmem:[%s1 + $0x20] sm:$0xf]
  %v69 = vld [vmem:[%s1 + $0x24] sm:$0xf]
  %v70 = vld [vmem:[%s1 + $0x28] sm:$0xf]
  %v71 = vld [vmem:[%s1 + $0x2c] sm:$0xf]
  %v72 = vld [vmem:[%s1 + $0x30] sm:$0xf]
  %v73 = vld [vmem:[%s1 + $0x34] sm:$0xf]
  %v74 = vld [vmem:[%s1 + $0x38] sm:$0xf]
  %v75 = vld [vmem:[%s1 + $0x3c] sm:$0xf]
  %v76 = vld [vmem:[%s1 + $0x40] sm:$0xf]
  %v77 = vld [vmem:[%s1 + $0x44] sm:$0xf]
  %v78 = vld [vmem:[%s1 + $0x48] sm:$0xf]
  %v79 = vld [vmem:[%s1 + $0x4c] sm:$0xf]
  %v80 = vld [vmem:[%s1 + $0x50] sm:$0xf]
  %v81 = vld [vmem:[%s1 + $0x54] sm:$0xf]
  %v82 = vld [vmem:[%s1 + $0x58] sm:$0xf]
  %v83 = vld [vmem:[%s1 + $0x5c] sm:$0xf]
  %v84 = vld [vmem:[%s1 + $0x60] sm:$0xf]
  %v85 = vld [vmem:[%s1 + $0x64] sm:$0xf]
  %v86 = vld [vmem:[%s1 + $0x68] sm:$0xf]
  %v87 = vld [vmem:[%s1 + $0x6c] sm:$0xf]
  %v88 = vld [vmem:[%s1 + $0x70] sm:$0xf]
  %v89 = vld [vmem:[%s1 + $0x74] sm:$0xf]
  %v90 = vld [vmem:[%s1 + $0x78] sm:$0xf]
  %v91 = vld [vmem:[%s1 + $0x7c] sm:$0xf]
  %v92 = vld [vmem:[%s1 + $0x80] sm:$0xf]
  %v93 = vld [vmem:[%s1 + $0x84] sm:$0xf]
  %v94 = vld [vmem:[%s1 + $0x88] sm:$0xf]
  %v95 = vld [vmem:[%s1 + $0x8c] sm:$0xf]
  %v96 = vld [vmem:[%s1 + $0x90] sm:$0xf]
  %v97 = vld [vmem:[%s1 + $0x94] sm:$0xf]
  %v98 = vld [vmem:[%s1 + $0x98] sm:$0xf]
  %v99 = vld [vmem:[%s1 + $0x9c] sm:$0xf]
  %v100 = vld [vmem:[%s1 + $0xa0] sm:$0xf]
  %v101 = vld [vmem:[%s1 + $0xa4] sm:$0xf]
  %v102 = vld [vmem:[%s1 + $0xa8] sm:$0xf]
  %v103 = vld [vmem:[%s1 + $0xac] sm:$0xf]
  %v104 = vld [vmem:[%s1 + $0xb0] sm:$0xf]
  %v105 = vld [vmem:[%s1 + $0xb4] sm:$0xf]
  %v106 = vld [vmem:[%s1 + $0xb8] sm:$0xf]
  %v107 = vld [vmem:[%s1 + $0xbc] sm:$0xf]
  %v108 = vld [vmem:[%s1 + $0xc0] sm:$0xf]
  %v109 = vld [vmem:[%s1 + $0xc4] sm:$0xf]
  %v110 = vld [vmem:[%s1 + $0xc8] sm:$0xf]
  %v111 = vld [vmem:[%s1 + $0xcc] sm:$0xf]
  %v112 = vld [vmem:[%s1 + $0xd0] sm:$0xf]
  %v113 = vld [vmem:[%s1 + $0xd4] sm:$0xf]
  %v114 = vld [vmem:[%s1 + $0xd8] sm:$0xf]
  %v115 = vld [vmem:[%s1 + $0xdc] sm:$0xf]
  %v116 = vld [vmem:[%s1 + $0xe0] sm:$0xf]
  %v117 = vld [vmem:[%s1 + $0xe4] sm:$0xf]
  %v118 = vld [vmem:[%s1 + $0xe8] sm:$0xf]
  %v119 = vld [vmem:[%s1 + $0xec] sm:$0xf]
  %v120 = vld [vmem:[%s1 + $0xf0] sm:$0xf]
  %v121 = vld [vmem:[%s1 + $0xf4] sm:$0xf]
  %v122 = vld [vmem:[%s1 + $0xf8] sm:$0xf]
  %v123 = vld [vmem:[%s1 + $0xfc] sm:$0xf]
  %v124 = vld [vmem:[%s1 + $0x100] sm:$0xf]
  %v125 = vld [vmem:[%s1 + $0x104] sm:$0xf]
  %v126 = vld [vmem:[%s1 + $0x108] sm:$0xf]
  %v127 = vld [vmem:[%s1 + $0x10c] sm:$0xf]
  %v128 = vld [vmem:[%s1 + $0x110] sm:$0xf]
  %v129 = vld [vmem:[%s1 + $0x114] sm:$0xf]
  %v130 = vld [vmem:[%s1 + $0x118] sm:$0xf]
  %v131 = vld [vmem:[%s1 + $0x11c] sm:$0xf]
  %v132 = vld [vmem:[%s1 + $0x120] sm:$0xf]
  %v133 = vld [vmem:[%s1 + $0x124] sm:$0xf]
  %v134 = vld [vmem:[%s1 + $0x128] sm:$0xf]
  %v135 = vld [vmem:[%s1 + $0x12c] sm:$0xf]
  %v136 = vld [vmem:[%s1 + $0x130] sm:$0xf]
  %v137 = vld [vmem:[%s1 + $0x134] sm:$0xf]
  %v138 = vld [vmem:[%s1 + $0x138] sm:$0xf]
  %v139 = vld [vmem:[%s1 + $0x13c] sm:$0xf]
  %v140 = vld [vmem:[%s1 + $0x140] sm:$0xf]
  %v141 = vld [vmem:[%s1 + $0x144] sm:$0xf]
  %v142 = vld [vmem:[%s1 + $0x148] sm:$0xf]
  %v143 = vld [vmem:[%s1 + $0x14c] sm:$0xf]
  %v144 = vld [vmem:[%s1 + $0x150] sm:$0xf]
  %v145 = vld [vmem:[%s1 + $0x154] sm:$0xf]
  %v146 = vld [vmem:[%s1 + $0x158] sm:$0xf]
  %v147 = vld [vmem:[%s1 + $0x15c] sm:$0xf]
  %v148 = vld [vmem:[%s1 + $0x160] sm:$0xf]
  %v149 = vld [vmem:[%s1 + $0x164] sm:$0xf]
  %v150 = vld [vmem:[%s1 + $0x168] sm:$0xf]
  %v151 = vld [vmem:[%s1 + $0x16c] sm:$0xf]
  %v152 = vld [vmem:[%s1 + $0x170] sm:$0xf]
  %v153 = vld [vmem:[%s1 + $0x174] sm:$0xf]
  %v154 = vld [vmem:[%s1 + $0x178] sm:$0xf]
  %v155 = vld [vmem:[%s1 + $0x17c] sm:$0xf]
  %v156 = vld [vmem:[%s1 + $0x180] sm:$0xf]
  %v157 = vld [vmem:[%s1 + $0x184] sm:$0xf]
  %v158 = vld [vmem:[%s1 + $0x188] sm:$0xf]
  %v159 = vld [vmem:[%s1 + $0x18c] sm:$0xf]
  %v160 = vld [vmem:[%s1 + $0x190] sm:$0xf]
  %v161 = vld [vmem:[%s1 + $0x194] sm:$0xf]
  %v162 = vld [vmem:[%s1 + $0x198] sm:$0xf]
  %v163 = vld [vmem:[%s1 + $0x19c] sm:$0xf]
  %v164 = vld [vmem:[%s1 + $0x1a0] sm:$0xf]
  %v165 = vld [vmem:[%s1 + $0x1a4] sm:$0xf]
  %v166 = vld [vmem:[%s1 + $0x1a8] sm:$0xf]
  %v167 = vld [vmem:[%s1 + $0x1ac] sm:$0xf]
  %v168 = vld [vmem:[%s1 + $0x1b0] sm:$0xf]
  %v169 = vld [vmem:[%s1 + $0x1b4] sm:$0xf]
  %v170 = vld [vmem:[%s1 + $0x1b8] sm:$0xf]
  %v171 = vld [vmem:[%s1 + $0x1bc] sm:$0xf]
  %v172 = vld [vmem:[%s1 + $0x1c0] sm:$0xf]
  %v173 = vld [vmem:[%s1 + $0x1c4] sm:$0xf]
  %v174 = vld [vmem:[%s1 + $0x1c8] sm:$0xf]
  %v175 = vld [vmem:[%s1 + $0x1cc] sm:$0xf]
  %v176 = vld [vmem:[%s1 + $0x1d0] sm:$0xf]
  %v177 = vld [vmem:[%s1 + $0x1d4] sm:$0xf]
  %v178 = vld [vmem:[%s1 + $0x1d8] sm:$0xf]
  %v179 = vld [vmem:[%s1 + $0x1dc] sm:$0xf]
  %v180 = vld [vmem:[%s1 + $0x1e0] sm:$0xf]
  %v181 = vld [vmem:[%s1 + $0x1e4] sm:$0xf]
  %v182 = vld [vmem:[%s1 + $0x1e8] sm:$0xf]
  %v183 = vld [vmem:[%s1 + $0x1ec] sm:$0xf]
  %v184 = vld [vmem:[%s1 + $0x1f0] sm:$0xf]
  %v185 = vld [vmem:[%s1 + $0x1f4] sm:$0xf]
  %v186 = vld [vmem:[%s1 + $0x1f8] sm:$0xf]
  %v187 = vld [vmem:[%s1 + $0x1fc] sm:$0xf]
  %v316 = vunpack.c.l.b16 %v60
  %v317 = vunpack.c.l.b16 %v61
  %v318 = vunpack.c.l.b16 %v62
  %v319 = vunpack.c.l.b16 %v63
  %v320 = vunpack.c.l.b16 %v64
  %v321 = vunpack.c.l.b16 %v65
  %v322 = vunpack.c.l.b16 %v66
  %v323 = vunpack.c.l.b16 %v67
  %v324 = vunpack.c.l.b16 %v68
  %v325 = vunpack.c.l.b16 %v69
  %v326 = vunpack.c.l.b16 %v70
  %v327 = vunpack.c.l.b16 %v71
  %v328 = vunpack.c.l.b16 %v72
  %v329 = vunpack.c.l.b16 %v73
  %v330 = vunpack.c.l.b16 %v74
  %v331 = vunpack.c.l.b16 %v75
  %v332 = vunpack.c.l.b16 %v76
  %v333 = vunpack.c.l.b16 %v77
  %v334 = vunpack.c.l.b16 %v78
  %v335 = vunpack.c.l.b16 %v79
  %v336 = vunpack.c.l.b16 %v80
  %v337 = vunpack.c.l.b16 %v81
  %v338 = vunpack.c.l.b16 %v82
  %v339 = vunpack.c.l.b16 %v83
  %v340 = vunpack.c.l.b16 %v84
  %v341 = vunpack.c.l.b16 %v85
  %v342 = vunpack.c.l.b16 %v86
  %v343 = vunpack.c.l.b16 %v87
  %v344 = vunpack.c.l.b16 %v88
  %v345 = vunpack.c.l.b16 %v89
  %v346 = vunpack.c.l.b16 %v90
  %v347 = vunpack.c.l.b16 %v91
  %v348 = vunpack.c.l.b16 %v92
  %v349 = vunpack.c.l.b16 %v93
  %v350 = vunpack.c.l.b16 %v94
  %v351 = vunpack.c.l.b16 %v95
  %v352 = vunpack.c.l.b16 %v96
  %v353 = vunpack.c.l.b16 %v97
  %v354 = vunpack.c.l.b16 %v98
  %v355 = vunpack.c.l.b16 %v99
  %v356 = vunpack.c.l.b16 %v100
  %v357 = vunpack.c.l.b16 %v101
  %v358 = vunpack.c.l.b16 %v102
  %v359 = vunpack.c.l.b16 %v103
  %v360 = vunpack.c.l.b16 %v104
  %v361 = vunpack.c.l.b16 %v105
  %v362 = vunpack.c.l.b16 %v106
  %v363 = vunpack.c.l.b16 %v107
  %v364 = vunpack.c.l.b16 %v108
  %v365 = vunpack.c.l.b16 %v109
  %v366 = vunpack.c.l.b16 %v110
  %v367 = vunpack.c.l.b16 %v111
  %v368 = vunpack.c.l.b16 %v112
  %v369 = vunpack.c.l.b16 %v113
  %v370 = vunpack.c.l.b16 %v114
  %v371 = vunpack.c.l.b16 %v115
  %v372 = vunpack.c.l.b16 %v116
  %v373 = vunpack.c.l.b16 %v117
  %v374 = vunpack.c.l.b16 %v118
  %v375 = vunpack.c.l.b16 %v119
  %v376 = vunpack.c.l.b16 %v120
  %v377 = vunpack.c.l.b16 %v121
  %v378 = vunpack.c.l.b16 %v122
  %v379 = vunpack.c.l.b16 %v123
  %v380 = vunpack.c.l.b16 %v124
  %v381 = vunpack.c.l.b16 %v125
  %v382 = vunpack.c.l.b16 %v126
  %v383 = vunpack.c.l.b16 %v127
  %v384 = vunpack.c.l.b16 %v128
  %v385 = vunpack.c.l.b16 %v129
  %v386 = vunpack.c.l.b16 %v130
  %v387 = vunpack.c.l.b16 %v131
  %v388 = vunpack.c.l.b16 %v132
  %v389 = vunpack.c.l.b16 %v133
  %v390 = vunpack.c.l.b16 %v134
  %v391 = vunpack.c.l.b16 %v135
  %v392 = vunpack.c.l.b16 %v136
  %v393 = vunpack.c.l.b16 %v137
  %v394 = vunpack.c.l.b16 %v138
  %v395 = vunpack.c.l.b16 %v139
  %v396 = vunpack.c.l.b16 %v140
  %v397 = vunpack.c.l.b16 %v141
  %v398 = vunpack.c.l.b16 %v142
  %v399 = vunpack.c.l.b16 %v143
  %v400 = vunpack.c.l.b16 %v144
  %v401 = vunpack.c.l.b16 %v145
  %v402 = vunpack.c.l.b16 %v146
  %v403 = vunpack.c.l.b16 %v147
  %v404 = vunpack.c.l.b16 %v148
  %v405 = vunpack.c.l.b16 %v149
  %v406 = vunpack.c.l.b16 %v150
  %v407 = vunpack.c.l.b16 %v151
  %v408 = vunpack.c.l.b16 %v152
  %v409 = vunpack.c.l.b16 %v153
  %v410 = vunpack.c.l.b16 %v154
  %v411 = vunpack.c.l.b16 %v155
  %v412 = vunpack.c.l.b16 %v156
  %v413 = vunpack.c.l.b16 %v157
  %v414 = vunpack.c.l.b16 %v158
  %v415 = vunpack.c.l.b16 %v159
  %v416 = vunpack.c.l.b16 %v160
  %v417 = vunpack.c.l.b16 %v161
  %v418 = vunpack.c.l.b16 %v162
  %v419 = vunpack.c.l.b16 %v163
  %v420 = vunpack.c.l.b16 %v164
  %v421 = vunpack.c.l.b16 %v165
  %v422 = vunpack.c.l.b16 %v166
  %v423 = vunpack.c.l.b16 %v167
  %v424 = vunpack.c.l.b16 %v168
  %v425 = vunpack.c.l.b16 %v169
  %v426 = vunpack.c.l.b16 %v170
  %v427 = vunpack.c.l.b16 %v171
  %v428 = vunpack.c.l.b16 %v172
  %v429 = vunpack.c.l.b16 %v173
  %v430 = vunpack.c.l.b16 %v174
  %v431 = vunpack.c.l.b16 %v175
  %v432 = vunpack.c.l.b16 %v176
  %v433 = vunpack.c.l.b16 %v177
  %v434 = vunpack.c.l.b16 %v178
  %v435 = vunpack.c.l.b16 %v179
  %v436 = vunpack.c.l.b16 %v180
  %v437 = vunpack.c.l.b16 %v181
  %v438 = vunpack.c.l.b16 %v182
  %v439 = vunpack.c.l.b16 %v183
  %v440 = vunpack.c.l.b16 %v184
  %v441 = vunpack.c.l.b16 %v185
  %v442 = vunpack.c.l.b16 %v186
  %v443 = vunpack.c.l.b16 %v187
  %v444 = vpack.c.b16 %v317, %v316
  %v445 = vpack.c.b16 %v319, %v318
  %v446 = vpack.c.b16 %v321, %v320
  %v447 = vpack.c.b16 %v323, %v322
  %v448 = vpack.c.b16 %v325, %v324
  %v449 = vpack.c.b16 %v327, %v326
  %v450 = vpack.c.b16 %v329, %v328
  %v451 = vpack.c.b16 %v331, %v330
  %v452 = vpack.c.b16 %v333, %v332
  %v453 = vpack.c.b16 %v335, %v334
  %v454 = vpack.c.b16 %v337, %v336
  %v455 = vpack.c.b16 %v339, %v338
  %v456 = vpack.c.b16 %v341, %v340
  %v457 = vpack.c.b16 %v343, %v342
  %v458 = vpack.c.b16 %v345, %v344
  %v459 = vpack.c.b16 %v347, %v346
  %v460 = vpack.c.b16 %v349, %v348
  %v461 = vpack.c.b16 %v351, %v350
  %v462 = vpack.c.b16 %v353, %v352
  %v463 = vpack.c.b16 %v355, %v354
  %v464 = vpack.c.b16 %v357, %v356
  %v465 = vpack.c.b16 %v359, %v358
  %v466 = vpack.c.b16 %v361, %v360
  %v467 = vpack.c.b16 %v363, %v362
  %v468 = vpack.c.b16 %v365, %v364
  %v469 = vpack.c.b16 %v367, %v366
  %v470 = vpack.c.b16 %v369, %v368
  %v471 = vpack.c.b16 %v371, %v370
  %v472 = vpack.c.b16 %v373, %v372
  %v473 = vpack.c.b16 %v375, %v374
  %v474 = vpack.c.b16 %v377, %v376
  %v475 = vpack.c.b16 %v379, %v378
  %v476 = vpack.c.b16 %v381, %v380
  %v477 = vpack.c.b16 %v383, %v382
  %v478 = vpack.c.b16 %v385, %v384
  %v479 = vpack.c.b16 %v387, %v386
  %v480 = vpack.c.b16 %v389, %v388
  %v481 = vpack.c.b16 %v391, %v390
  %v482 = vpack.c.b16 %v393, %v392
  %v483 = vpack.c.b16 %v395, %v394
  %v484 = vpack.c.b16 %v397, %v396
  %v485 = vpack.c.b16 %v399, %v398
  %v486 = vpack.c.b16 %v401, %v400
  %v487 = vpack.c.b16 %v403, %v402
  %v488 = vpack.c.b16 %v405, %v404
  %v489 = vpack.c.b16 %v407, %v406
  %v490 = vpack.c.b16 %v409, %v408
  %v491 = vpack.c.b16 %v411, %v410
  %v492 = vpack.c.b16 %v413, %v412
  %v493 = vpack.c.b16 %v415, %v414
  %v494 = vpack.c.b16 %v417, %v416
  %v495 = vpack.c.b16 %v419, %v418
  %v496 = vpack.c.b16 %v421, %v420
  %v497 = vpack.c.b16 %v423, %v422
  %v498 = vpack.c.b16 %v425, %v424
  %v499 = vpack.c.b16 %v427, %v426
  %v500 = vpack.c.b16 %v429, %v428
  %v501 = vpack.c.b16 %v431, %v430
  %v502 = vpack.c.b16 %v433, %v432
  %v503 = vpack.c.b16 %v435, %v434
  %v504 = vpack.c.b16 %v437, %v436
  %v505 = vpack.c.b16 %v439, %v438
  %v506 = vpack.c.b16 %v441, %v440
  %v507 = vpack.c.b16 %v443, %v442
  %572 = vmatprep.subr.bf16.mxu0 0
  %573 = vmatpush1.bf16.msra.mxu0 %v444
  %574 = vmatprep.subr.bf16.mxu0 0
  %575 = vmatpush1.bf16.msra.mxu0 %v445
  %576 = vmatprep.subr.bf16.mxu0 0
  %577 = vmatpush1.bf16.msra.mxu0 %v446
  %578 = vmatprep.subr.bf16.mxu0 0
  %579 = vmatpush1.bf16.msra.mxu0 %v447
  %580 = vmatprep.subr.bf16.mxu0 0
  %581 = vmatpush1.bf16.msra.mxu0 %v448
  %582 = vmatprep.subr.bf16.mxu0 0
  %583 = vmatpush1.bf16.msra.mxu0 %v449
  %584 = vmatprep.subr.bf16.mxu0 0
  %585 = vmatpush1.bf16.msra.mxu0 %v450
  %586 = vmatprep.subr.bf16.mxu0 0
  %587 = vmatpush1.bf16.msra.mxu0 %v451
  %588 = vmatprep.subr.bf16.mxu0 0
  %589 = vmatpush1.bf16.msra.mxu0 %v452
  %590 = vmatprep.subr.bf16.mxu0 0
  %591 = vmatpush1.bf16.msra.mxu0 %v453
  %592 = vmatprep.subr.bf16.mxu0 0
  %593 = vmatpush1.bf16.msra.mxu0 %v454
  %594 = vmatprep.subr.bf16.mxu0 0
  %595 = vmatpush1.bf16.msra.mxu0 %v455
  %596 = vmatprep.subr.bf16.mxu0 0
  %597 = vmatpush1.bf16.msra.mxu0 %v456
  %598 = vmatprep.subr.bf16.mxu0 0
  %599 = vmatpush1.bf16.msra.mxu0 %v457
  %600 = vmatprep.subr.bf16.mxu0 0
  %601 = vmatpush1.bf16.msra.mxu0 %v458
  %602 = vmatprep.subr.bf16.mxu0 0
  %603 = vmatpush1.bf16.msra.mxu0 %v459
  %604 = vmatprep.mubr.bf16.mxu0 %v53
  %605 = vmatmul.mubr.bf16.gmra.mrb[0].mxu0 %v52
  %v606 = vpop.f32.mrb[0].mxu0
  %v607 = vadd.f32 0.0, %v606
  %v608 = vpop.f32.mrb[0].mxu0
  %v609 = vpop.f32.mrb[0].mxu0
  %v610 = vadd.f32 0.0, %v609
  %v611 = vpop.f32.mrb[0].mxu0
  %612 = vdwg.mxu0
  %613 = vmatprep.subr.bf16.mxu0 0
  %614 = vmatpush1.bf16.msra.mxu0 %v460
  %615 = vmatprep.subr.bf16.mxu0 0
  %616 = vmatpush1.bf16.msra.mxu0 %v461
  %617 = vmatprep.subr.bf16.mxu0 0
  %618 = vmatpush1.bf16.msra.mxu0 %v462
  %619 = vmatprep.subr.bf16.mxu0 0
  %620 = vmatpush1.bf16.msra.mxu0 %v463
  %621 = vmatprep.subr.bf16.mxu0 0
  %622 = vmatpush1.bf16.msra.mxu0 %v464
  %623 = vmatprep.subr.bf16.mxu0 0
  %624 = vmatpush1.bf16.msra.mxu0 %v465
  %625 = vmatprep.subr.bf16.mxu0 0
  %626 = vmatpush1.bf16.msra.mxu0 %v466
  %627 = vmatprep.subr.bf16.mxu0 0
  %628 = vmatpush1.bf16.msra.mxu0 %v467
  %629 = vmatprep.subr.bf16.mxu0 0
  %630 = vmatpush1.bf16.msra.mxu0 %v468
  %631 = vmatprep.subr.bf16.mxu0 0
  %632 = vmatpush1.bf16.msra.mxu0 %v469
  %633 = vmatprep.subr.bf16.mxu0 0
  %634 = vmatpush1.bf16.msra.mxu0 %v470
  %635 = vmatprep.subr.bf16.mxu0 0
  %636 = vmatpush1.bf16.msra.mxu0 %v471
  %637 = vmatprep.subr.bf16.mxu0 0
  %638 = vmatpush1.bf16.msra.mxu0 %v472
  %639 = vmatprep.subr.bf16.mxu0 0
  %640 = vmatpush1.bf16.msra.mxu0 %v473
  %641 = vmatprep.subr.bf16.mxu0 0
  %642 = vmatpush1.bf16.msra.mxu0 %v474
  %643 = vmatprep.subr.bf16.mxu0 0
  %644 = vmatpush1.bf16.msra.mxu0 %v475
  %645 = vmatprep.mubr.bf16.mxu0 %v55
  %646 = vmatmul.mubr.bf16.gmra.mrb[0].mxu0 %v54
  %v647 = vpop.f32.mrb[0].mxu0
  %v648 = vadd.f32 %v607, %v647
  %v649 = vpop.f32.mrb[0].mxu0
  %v650 = vpop.f32.mrb[0].mxu0
  %v651 = vadd.f32 %v610, %v650
  %v652 = vpop.f32.mrb[0].mxu0
  %653 = vdwg.mxu0
  %654 = vmatprep.subr.bf16.mxu0 0
  %655 = vmatpush1.bf16.msra.mxu0 %v476
  %656 = vmatprep.subr.bf16.mxu0 0
  %657 = vmatpush1.bf16.msra.mxu0 %v477
  %658 = vmatprep.subr.bf16.mxu0 0
  %659 = vmatpush1.bf16.msra.mxu0 %v478
  %660 = vmatprep.subr.bf16.mxu0 0
  %661 = vmatpush1.bf16.msra.mxu0 %v479
  %662 = vmatprep.subr.bf16.mxu0 0
  %663 = vmatpush1.bf16.msra.mxu0 %v480
  %664 = vmatprep.subr.bf16.mxu0 0
  %665 = vmatpush1.bf16.msra.mxu0 %v481
  %666 = vmatprep.subr.bf16.mxu0 0
  %667 = vmatpush1.bf16.msra.mxu0 %v482
  %668 = vmatprep.subr.bf16.mxu0 0
  %669 = vmatpush1.bf16.msra.mxu0 %v483
  %670 = vmatprep.subr.bf16.mxu0 0
  %671 = vmatpush1.bf16.msra.mxu0 %v484
  %672 = vmatprep.subr.bf16.mxu0 0
  %673 = vmatpush1.bf16.msra.mxu0 %v485
  %674 = vmatprep.subr.bf16.mxu0 0
  %675 = vmatpush1.bf16.msra.mxu0 %v486
  %676 = vmatprep.subr.bf16.mxu0 0
  %677 = vmatpush1.bf16.msra.mxu0 %v487
  %678 = vmatprep.subr.bf16.mxu0 0
  %679 = vmatpush1.bf16.msra.mxu0 %v488
  %680 = vmatprep.subr.bf16.mxu0 0
  %681 = vmatpush1.bf16.msra.mxu0 %v489
  %682 = vmatprep.subr.bf16.mxu0 0
  %683 = vmatpush1.bf16.msra.mxu0 %v490
  %684 = vmatprep.subr.bf16.mxu0 0
  %685 = vmatpush1.bf16.msra.mxu0 %v491
  %686 = vmatprep.mubr.bf16.mxu0 %v57
  %687 = vmatmul.mubr.bf16.gmra.mrb[0].mxu0 %v56
  %v688 = vpop.f32.mrb[0].mxu0
  %v689 = vadd.f32 %v648, %v688
  %v690 = vpop.f32.mrb[0].mxu0
  %v691 = vpop.f32.mrb[0].mxu0
  %v692 = vadd.f32 %v651, %v691
  %v693 = vpop.f32.mrb[0].mxu0
  %694 = vdwg.mxu0
  %695 = vmatprep.subr.bf16.mxu0 0
  %696 = vmatpush1.bf16.msra.mxu0 %v492
  %697 = vmatprep.subr.bf16.mxu0 0
  %698 = vmatpush1.bf16.msra.mxu0 %v493
  %699 = vmatprep.subr.bf16.mxu0 0
  %700 = vmatpush1.bf16.msra.mxu0 %v494
  %701 = vmatprep.subr.bf16.mxu0 0
  %702 = vmatpush1.bf16.msra.mxu0 %v495
  %703 = vmatprep.subr.bf16.mxu0 0
  %704 = vmatpush1.bf16.msra.mxu0 %v496
  %705 = vmatprep.subr.bf16.mxu0 0
  %706 = vmatpush1.bf16.msra.mxu0 %v497
  %707 = vmatprep.subr.bf16.mxu0 0
  %708 = vmatpush1.bf16.msra.mxu0 %v498
  %709 = vmatprep.subr.bf16.mxu0 0
  %710 = vmatpush1.bf16.msra.mxu0 %v499
  %711 = vmatprep.subr.bf16.mxu0 0
  %712 = vmatpush1.bf16.msra.mxu0 %v500
  %713 = vmatprep.subr.bf16.mxu0 0
  %714 = vmatpush1.bf16.msra.mxu0 %v501
  %715 = vmatprep.subr.bf16.mxu0 0
  %716 = vmatpush1.bf16.msra.mxu0 %v502
  %717 = vmatprep.subr.bf16.mxu0 0
  %718 = vmatpush1.bf16.msra.mxu0 %v503
  %719 = vmatprep.subr.bf16.mxu0 0
  %720 = vmatpush1.bf16.msra.mxu0 %v504
  %721 = vmatprep.subr.bf16.mxu0 0
  %722 = vmatpush1.bf16.msra.mxu0 %v505
  %723 = vmatprep.subr.bf16.mxu0 0
  %724 = vmatpush1.bf16.msra.mxu0 %v506
  %725 = vmatprep.subr.bf16.mxu0 0
  %726 = vmatpush1.bf16.msra.mxu0 %v507
  %727 = vmatprep.mubr.bf16.mxu0 %v59
  %728 = vmatmul.mubr.bf16.gmra.mrb[0].mxu0 %v58
  %v729 = vpop.f32.mrb[0].mxu0
  %v730 = vadd.f32 %v689, %v729
  %v731 = vpop.f32.mrb[0].mxu0
  %v732 = vpop.f32.mrb[0].mxu0
  %v733 = vadd.f32 %v692, %v732
  %v734 = vpop.f32.mrb[0].mxu0
  %735 = vdwg.mxu0
  %v736 = vadd.f32 %v34, %v730
  %v737 = vadd.f32 %v35, %v733
  %vm738 = vcmask 261120
  %739 = vst.msk [vmem:[#allocation2] sm:$0xff] %vm738, %v736
  %740 = vst.msk [vmem:[#allocation2 + $0x8] sm:$0xff] %vm738, %v737
  // Predicated region
  $region34: #{contrastive_model.1} parent=0 // pred_check
    %p741 = pneg %p27
  $region35: #{contrastive_model.1} parent=0 // pred_check_branch
    %743 = sbr.rel (%p741) target = $region37
  $region36: #{contrastive_model.1} parent=0 // pred_region
    %v744 = vld [vmem:[#allocation2] sm:$0xff]
    %v745 = vld [vmem:[#allocation2 + $0x8] sm:$0xff]
    %v746 = vld [vmem:[%s2] sm:$0x1]
    %v748 = vlaneseq
    %v749 = vshrl.u32 %v748, 7
    %v750 = vsub.s32 0, %v749
    %v751 = vrot.slane %v746, %v750
    %v753 = vadd.f32 %v744, %v751
    %v754 = vadd.f32 %v745, %v751
    %v755 = vpack.c.bf16 %v754, %v753
    %v756 = vld [vmem:[%s3] sm:$0xf]
    %v757 = vld [vmem:[%s3 + $0x4] sm:$0xf]
    %v758 = vld [vmem:[%s3 + $0x8] sm:$0xf]
    %v759 = vld [vmem:[%s3 + $0xc] sm:$0xf]
    %v760 = vld [vmem:[%s4] sm:$0x1]
    %v762 = vlaneseq
    %v763 = vshrl.u32 %v762, 7
    %v764 = vsub.s32 0, %v763
    %v765 = vrot.slane %v760, %v764
    %v771 = vunpack.c.l.b16 %v756
    %v772 = vunpack.c.l.b16 %v757
    %v773 = vunpack.c.l.b16 %v758
    %v774 = vunpack.c.l.b16 %v759
    %v775 = vpack.c.b16 %v772, %v771
    %v776 = vpack.c.b16 %v774, %v773
    %v780 = vsel %vm738, %v755, 0
    %782 = vmatprep.subr.bf16.mxu0 0
    %783 = vmatpush1.bf16.msra.mxu0 %v775
    %784 = vmatprep.subr.bf16.mxu0 0
    %785 = vmatpush1.bf16.msra.mxu0 %v776
    %786 = vmatprep.subr.bf16.mxu0 0
    %787 = vmatpush1.bf16.msra.mxu0 0
    %788 = vmatprep.subr.bf16.mxu0 0
    %789 = vmatpush1.bf16.msra.mxu0 0
    %790 = vmatprep.subr.bf16.mxu0 0
    %791 = vmatpush1.bf16.msra.mxu0 0
    %792 = vmatprep.subr.bf16.mxu0 0
    %793 = vmatpush1.bf16.msra.mxu0 0
    %794 = vmatprep.subr.bf16.mxu0 0
    %795 = vmatpush1.bf16.msra.mxu0 0
    %796 = vmatprep.subr.bf16.mxu0 0
    %797 = vmatpush1.bf16.msra.mxu0 0
    %798 = vmatprep.subr.bf16.mxu0 0
    %799 = vmatpush1.bf16.msra.mxu0 0
    %800 = vmatprep.subr.bf16.mxu0 0
    %801 = vmatpush1.bf16.msra.mxu0 0
    %802 = vmatprep.subr.bf16.mxu0 0
    %803 = vmatpush1.bf16.msra.mxu0 0
    %804 = vmatprep.subr.bf16.mxu0 0
    %805 = vmatpush1.bf16.msra.mxu0 0
    %806 = vmatprep.subr.bf16.mxu0 0
    %807 = vmatpush1.bf16.msra.mxu0 0
    %808 = vmatprep.subr.bf16.mxu0 0
    %809 = vmatpush1.bf16.msra.mxu0 0
    %810 = vmatprep.subr.bf16.mxu0 0
    %811 = vmatpush1.bf16.msra.mxu0 0
    %812 = vmatprep.subr.bf16.mxu0 0
    %813 = vmatpush1.bf16.msra.mxu0 0
    %814 = vmatprep.mubr.bf16.mxu0 0
    %815 = vmatmul.mubr.bf16.gmra.mrb[0].mxu0 %v780
    %v816 = vpop.f32.mrb[0].mxu0
    %v817 = vadd.f32 %v765, %v816
    %v818 = vpop.f32.mrb[0].mxu0
    %v819 = vpop.f32.mrb[0].mxu0
    %v820 = vadd.f32 %v765, %v819
    %v821 = vpop.f32.mrb[0].mxu0
    %822 = vdwg.mxu0
    %v823 = vmax.f32 %v817, 0.0
    %v824 = vmax.f32 %v820, 0.0
    %v825 = vpack.c.bf16 %v824, %v823
    %v826 = vld [vmem:[%s5] sm:$0xf]
    %v827 = vld [vmem:[%s5 + $0x4] sm:$0xf]
    %v828 = vld [vmem:[%s5 + $0x8] sm:$0xf]
    %v829 = vld [vmem:[%s5 + $0xc] sm:$0xf]
    %v830 = vld [vmem:[%s6] sm:$0x1]
    %v832 = vlaneseq
    %v833 = vshrl.u32 %v832, 7
    %v834 = vsub.s32 0, %v833
    %v835 = vrot.slane %v830, %v834
    %v841 = vunpack.c.l.b16 %v826
    %v842 = vunpack.c.l.b16 %v827
    %v843 = vunpack.c.l.b16 %v828
    %v844 = vunpack.c.l.b16 %v829
    %v845 = vpack.c.b16 %v842, %v841
    %v846 = vpack.c.b16 %v844, %v843
    %v850 = vsel %vm738, %v825, 0
    %852 = vmatprep.subr.bf16.mxu0 0
    %853 = vmatpush1.bf16.msra.mxu0 %v845
    %854 = vmatprep.subr.bf16.mxu0 0
    %855 = vmatpush1.bf16.msra.mxu0 %v846
    %856 = vmatprep.subr.bf16.mxu0 0
    %857 = vmatpush1.bf16.msra.mxu0 0
    %858 = vmatprep.subr.bf16.mxu0 0
    %859 = vmatpush1.bf16.msra.mxu0 0
    %860 = vmatprep.subr.bf16.mxu0 0
    %861 = vmatpush1.bf16.msra.mxu0 0
    %862 = vmatprep.subr.bf16.mxu0 0
    %863 = vmatpush1.bf16.msra.mxu0 0
    %864 = vmatprep.subr.bf16.mxu0 0
    %865 = vmatpush1.bf16.msra.mxu0 0
    %866 = vmatprep.subr.bf16.mxu0 0
    %867 = vmatpush1.bf16.msra.mxu0 0
    %868 = vmatprep.subr.bf16.mxu0 0
    %869 = vmatpush1.bf16.msra.mxu0 0
    %870 = vmatprep.subr.bf16.mxu0 0
    %871 = vmatpush1.bf16.msra.mxu0 0
    %872 = vmatprep.subr.bf16.mxu0 0
    %873 = vmatpush1.bf16.msra.mxu0 0
    %874 = vmatprep.subr.bf16.mxu0 0
    %875 = vmatpush1.bf16.msra.mxu0 0
    %876 = vmatprep.subr.bf16.mxu0 0
    %877 = vmatpush1.bf16.msra.mxu0 0
    %878 = vmatprep.subr.bf16.mxu0 0
    %879 = vmatpush1.bf16.msra.mxu0 0
    %880 = vmatprep.subr.bf16.mxu0 0
    %881 = vmatpush1.bf16.msra.mxu0 0
    %882 = vmatprep.subr.bf16.mxu0 0
    %883 = vmatpush1.bf16.msra.mxu0 0
    %884 = vmatprep.mubr.bf16.mxu0 0
    %885 = vmatmul.mubr.bf16.gmra.mrb[0].mxu0 %v850
    %v886 = vpop.f32.mrb[0].mxu0
    %v887 = vadd.f32 %v835, %v886
    %v888 = vpop.f32.mrb[0].mxu0
    %v889 = vpop.f32.mrb[0].mxu0
    %v890 = vadd.f32 %v835, %v889
    %v891 = vpop.f32.mrb[0].mxu0
    %892 = vdwg.mxu0
    %v893 = vmul.f32 %v887, %v887
    %v894 = vmul.f32 %v890, %v890
    %895 = vadd.xlane.f32.xlu0 %v893
    %v896 = vpop.xlane.xlu0 %895
    %897 = vadd.xlane.f32.xlu0 %v894
    %v898 = vpop.xlane.xlu0 %897
    %v899 = vmax.f32 %v896, 1e-24
    %v900 = vmax.f32 %v898, 1e-24
    %v901 = vrsqrt.pop %v899
    %v902 = vrsqrt.pop %v900
    %v903 = vmul.f32 %v887, %v901
    %v904 = vmul.f32 %v890, %v902
    %905 = vst [vmem:[%s7] sm:$0xff] %v903
    %906 = vst [vmem:[%s7 + $0x8] sm:$0xff] %v904
  $region37: #{contrastive_model.1} parent=0 // pred_fallthru
    _
  // Predicated region
  $region38: #{contrastive_model.1} parent=0 // pred_check
    _
  $region39: #{contrastive_model.1} parent=0 // pred_check_branch
    %908 = sbr.rel (0) target = $region41
  $region40: #{contrastive_model.1} parent=0 // pred_region
    _
  $region41: #{contrastive_model.1} parent=0 // pred_fallthru
    _
  // Predicated region
  $region42: #{contrastive_model.1} parent=0 // pred_check
    _
  $region43: #{contrastive_model.1} parent=0 // pred_check_branch
    %910 = sbr.rel (0) target = $region45
  $region44: #{contrastive_model.1} parent=0 // pred_region
    _
  $region45: #{contrastive_model.1} parent=0 // pred_fallthru
    _

</llo_original>
